<compile_context>
chip_gen: v7x
topology: tpu7x:2x2x1
jax: 0.10.0
libtpu: 0.0.40
codegen_flags: <defaults>
</compile_context>

<pallas_src>
import jax
import jax.numpy as jnp
from jax.experimental import pallas as pl
from jax.experimental.pallas import tpu as pltpu


def bn_add_kernel(x_ref, r_ref, gb_ref, o_ref):
    """Training-mode BatchNorm2d (biased batch var, eps=1e-5) + residual add.

    x_ref, r_ref : (P, C)  P = N*H*W pixels on sublanes, C channels on lanes
    gb_ref       : (2, C)  row 0 = gamma, row 1 = beta
    o_ref        : (P, C)
    """
    x = x_ref[...]                                   # (P, C) f32
    p = x.shape[0]                                   # static reduction size
    inv_p = 1.0 / p

    # One-pass stats: both reductions are independent -> issued back-to-back.
    # Per-channel results are lane-dense (1, C) = 4 vregs each.
    s1 = jnp.sum(x, axis=0, keepdims=True)           # (1, C)  sum(x)
    s2 = jnp.sum(x * x, axis=0, keepdims=True)       # (1, C)  sum(x^2)
    mean = s1 * inv_p
    var = s2 * inv_p - mean * mean                   # biased variance
    var = jnp.maximum(var, 0.0)                      # guard f32 cancellation
    inv = jax.lax.rsqrt(var + 1e-5)                  # 4 EUP ops

    gb = gb_ref[...]                                 # (2, C)
    gamma = gb[0:1, :]                               # (1, C)
    beta = gb[1:2, :]                                # (1, C)

    # Fold affine into a single scale/shift so the (P, C) work is one FMA
    # plus the residual add; store is fully lane-dense (unmasked vst).
    scale = inv * gamma                              # (1, C)
    shift = beta - mean * scale                      # (1, C)
    o_ref[...] = x * scale + shift + r_ref[...]


@jax.jit
def batchnorm_add(x112, x108, gamma, beta):
    """x112, x108: NCHW float32. Returns BatchNorm2d(x112) + x108, NCHW."""
    N, C, H, W = x112.shape
    P = N * H * W

    # NCHW -> (N*H*W, C): channels land on lanes (lane-dense slabs).
    # Works for any N; batch stats reduce over all P pixels per channel.
    x2 = jnp.transpose(x112, (0, 2, 3, 1)).reshape(P, C)
    r2 = jnp.transpose(x108, (0, 2, 3, 1)).reshape(P, C)
    gb = jnp.stack([gamma, beta], axis=0)            # (2, C) single dense DMA

    out = pl.pallas_call(
        bn_add_kernel,
        out_shape=jax.ShapeDtypeStruct((P, C), x112.dtype),
        in_specs=[
            pl.BlockSpec(memory_space=pltpu.MemorySpace.VMEM),  # x slab
            pl.BlockSpec(memory_space=pltpu.MemorySpace.VMEM),  # residual slab
            pl.BlockSpec(memory_space=pltpu.MemorySpace.VMEM),  # gamma/beta
        ],
        out_specs=pl.BlockSpec(memory_space=pltpu.MemorySpace.VMEM),
        # Reuse the residual slab's buffer for the output; it is a jit-internal
        # intermediate, so no caller-side donation is needed.
        input_output_aliases={1: 0},
    )(x2, r2, gb)

    return jnp.transpose(out.reshape(N, H, W, C), (0, 3, 1, 2))


if __name__ == "__main__":
    key = jax.random.PRNGKey(0)
    k1, k2, k3, k4 = jax.random.split(key, 4)

    # Shapes from the module: x112, x108 are [1, 512, 7, 7]
    N, C, H, W = 1, 512, 7, 7
    x112 = jax.random.normal(k1, (N, C, H, W), dtype=jnp.float32)
    x108 = jax.random.normal(k2, (N, C, H, W), dtype=jnp.float32)

    # BatchNorm2d(512, affine=True); use non-trivial affine params so the
    # packed (2, C) gamma/beta path is actually exercised.
    gamma = 1.0 + 0.1 * jax.random.normal(k3, (C,), dtype=jnp.float32)
    beta = 0.1 * jax.random.normal(k4, (C,), dtype=jnp.float32)

    # Pure-JAX reference of training-mode batchnorm + add (computed first so
    # buffer aliasing in the kernel cannot interfere with the check).
    mean = jnp.mean(x112, axis=(0, 2, 3), keepdims=True)
    var = jnp.var(x112, axis=(0, 2, 3), keepdims=True)
    ref = (x112 - mean) * jax.lax.rsqrt(var + 1e-5)
    ref = ref * gamma.reshape(1, C, 1, 1) + beta.reshape(1, C, 1, 1) + x108
    ref = jax.block_until_ready(ref)

    out = batchnorm_add(x112, x108, gamma, beta)
    out = jax.block_until_ready(out)

    assert out.shape == (N, C, H, W)
    assert jnp.allclose(out, ref, atol=1e-4, rtol=1e-4)
    print("KERNEL_OK")
</pallas_src>

<mosaic_0001>
module attributes {stable_mosaic.version = 11 : i64} {
  func.func @bn_add_kernel(%arg0: memref<49x512xf32, #tpu.memory_space<vmem>>, %arg1: memref<49x512xf32, #tpu.memory_space<vmem>>, %arg2: memref<2x512xf32, #tpu.memory_space<vmem>>, %arg3: memref<49x512xf32, #tpu.memory_space<vmem>>) attributes {dimension_semantics = [], scalar_prefetch = 0 : i64, scratch_operands = 0 : i64, tpu.core_type = #tpu.core_type<tc>} {
    %c0 = arith.constant 0 : index
    %c0_0 = arith.constant 0 : index
    %0 = vector.load %arg0[%c0, %c0_0] : memref<49x512xf32, #tpu.memory_space<vmem>>, vector<49x512xf32>
    %cst = arith.constant dense<0.000000e+00> : vector<512xf32>
    %1 = vector.multi_reduction <add>, %0, %cst [0] : vector<49x512xf32> to vector<512xf32>
    %2 = vector.shape_cast %1 : vector<512xf32> to vector<1x512xf32>
    %3 = arith.mulf %0, %0 : vector<49x512xf32>
    %cst_1 = arith.constant dense<0.000000e+00> : vector<512xf32>
    %4 = vector.multi_reduction <add>, %3, %cst_1 [0] : vector<49x512xf32> to vector<512xf32>
    %5 = vector.shape_cast %4 : vector<512xf32> to vector<1x512xf32>
    %cst_2 = arith.constant 0.0204081628 : f32
    %6 = vector.broadcast %cst_2 : f32 to vector<1x512xf32>
    %7 = arith.mulf %2, %6 : vector<1x512xf32>
    %cst_3 = arith.constant 0.0204081628 : f32
    %8 = vector.broadcast %cst_3 : f32 to vector<1x512xf32>
    %9 = arith.mulf %5, %8 : vector<1x512xf32>
    %10 = arith.mulf %7, %7 : vector<1x512xf32>
    %11 = arith.subf %9, %10 : vector<1x512xf32>
    %cst_4 = arith.constant 0.000000e+00 : f32
    %12 = vector.broadcast %cst_4 : f32 to vector<1x512xf32>
    %13 = arith.maximumf %11, %12 : vector<1x512xf32>
    %cst_5 = arith.constant 9.99999974E-6 : f32
    %14 = vector.broadcast %cst_5 : f32 to vector<1x512xf32>
    %15 = arith.addf %13, %14 : vector<1x512xf32>
    %16 = math.rsqrt %15 : vector<1x512xf32>
    %c0_6 = arith.constant 0 : index
    %c0_7 = arith.constant 0 : index
    %17 = vector.load %arg2[%c0_6, %c0_7] : memref<2x512xf32, #tpu.memory_space<vmem>>, vector<2x512xf32>
    %18 = vector.extract_strided_slice %17 {offsets = [0, 0], sizes = [1, 512], strides = [1, 1]} : vector<2x512xf32> to vector<1x512xf32>
    %19 = vector.extract_strided_slice %17 {offsets = [1, 0], sizes = [1, 512], strides = [1, 1]} : vector<2x512xf32> to vector<1x512xf32>
    %20 = arith.mulf %16, %18 : vector<1x512xf32>
    %21 = arith.mulf %7, %20 : vector<1x512xf32>
    %22 = arith.subf %19, %21 : vector<1x512xf32>
    %23 = vector.broadcast %20 : vector<1x512xf32> to vector<49x512xf32>
    %24 = arith.mulf %0, %23 : vector<49x512xf32>
    %25 = vector.broadcast %22 : vector<1x512xf32> to vector<49x512xf32>
    %26 = arith.addf %24, %25 : vector<49x512xf32>
    %c0_8 = arith.constant 0 : index
    %c0_9 = arith.constant 0 : index
    %27 = vector.load %arg1[%c0_8, %c0_9] : memref<49x512xf32, #tpu.memory_space<vmem>>, vector<49x512xf32>
    %28 = arith.addf %26, %27 : vector<49x512xf32>
    %c0_10 = arith.constant 0 : index
    %c0_11 = arith.constant 0 : index
    %29 = vector.load %arg3[%c0_10, %c0_11] : memref<49x512xf32, #tpu.memory_space<vmem>>, vector<49x512xf32>
    tpu.vector_store %arg3[%c0_10, %c0_11], %28 {strides = array<i32>} : memref<49x512xf32, #tpu.memory_space<vmem>>, vector<49x512xf32>,
    return
  }
}

</mosaic_0001>

<llo_original>
// kernel: batchnorm_add.1
$region0: #{batchnorm_add.1}
  #allocation0 [shape = 'u32[]', space=smem, size = 0x4, offset = 0x4, fixed_abs, tag = 'smem constant byte address 0x4 - core index']
  #allocation1 [shape = 'u32[144,128]{1,0:T(1,128)}', space=vmem, size = 0x12000, scoped, tag = 'internal scratch']
  %s0 = inlined_call_operand.vmem [shape: f32[49,512], index: 0, kind: input, shape index: {}]
  %s1 = inlined_call_operand.vmem [shape: f32[49,512], index: 1, kind: input, shape index: {}, may-alias: {1,3}]
  %s2 = inlined_call_operand.vmem [shape: f32[2,512], index: 2, kind: input, shape index: {}]
  %s3 = inlined_call_operand.vmem [shape: f32[49,512], index: 3, kind: output, shape index: {}, may-alias: {1,3}]
  %s4 = sld [smem:[#allocation0]]
  $region22: #{batchnorm_add.1} parent=0
    _
  %s6 = ssub.s32 1, %s4
  %s7 = scalar_select 0, %s6, %s4
  // Predicated region
  $region2: #{batchnorm_add.1} parent=0 // pred_check
    _
  $region3: #{batchnorm_add.1} parent=0 // pred_check_branch
    %9 = sbr.rel (0) target = $region5
  $region4: #{batchnorm_add.1} parent=0 // pred_region
    _
  $region5: #{batchnorm_add.1} parent=0 // pred_fallthru
    _
  // Predicated region
  $region6: #{batchnorm_add.1} parent=0 // pred_check
    _
  $region7: #{batchnorm_add.1} parent=0 // pred_check_branch
    %11 = sbr.rel (0) target = $region9
  $region8: #{batchnorm_add.1} parent=0 // pred_region
    _
  $region9: #{batchnorm_add.1} parent=0 // pred_fallthru
    _
  // Predicated region
  $region10: #{batchnorm_add.1} parent=0 // pred_check
    _
  $region11: #{batchnorm_add.1} parent=0 // pred_check_branch
    %13 = sbr.rel (0) target = $region13
  $region12: #{batchnorm_add.1} parent=0 // pred_region
    _
  $region13: #{batchnorm_add.1} parent=0 // pred_fallthru
    _
  %v14 = vld [vmem:[%s0] sm:$0xff]
  %v15 = vld [vmem:[%s0 + $0x8] sm:$0xff]
  %v16 = vld [vmem:[%s0 + $0x10] sm:$0xff]
  %v17 = vld [vmem:[%s0 + $0x18] sm:$0xff]
  %v18 = vld [vmem:[%s0 + $0x20] sm:$0xff]
  %v19 = vld [vmem:[%s0 + $0x28] sm:$0xff]
  %v20 = vld [vmem:[%s0 + $0x30] sm:$0xff]
  %v21 = vld [vmem:[%s0 + $0x38] sm:$0xff]
  %v22 = vld [vmem:[%s0 + $0x40] sm:$0xff]
  %v23 = vld [vmem:[%s0 + $0x48] sm:$0xff]
  %v24 = vld [vmem:[%s0 + $0x50] sm:$0xff]
  %v25 = vld [vmem:[%s0 + $0x58] sm:$0xff]
  %v26 = vld [vmem:[%s0 + $0x60] sm:$0xff]
  %v27 = vld [vmem:[%s0 + $0x68] sm:$0xff]
  %v28 = vld [vmem:[%s0 + $0x70] sm:$0xff]
  %v29 = vld [vmem:[%s0 + $0x78] sm:$0xff]
  %v30 = vld [vmem:[%s0 + $0x80] sm:$0xff]
  %v31 = vld [vmem:[%s0 + $0x88] sm:$0xff]
  %v32 = vld [vmem:[%s0 + $0x90] sm:$0xff]
  %v33 = vld [vmem:[%s0 + $0x98] sm:$0xff]
  %v34 = vld [vmem:[%s0 + $0xa0] sm:$0xff]
  %v35 = vld [vmem:[%s0 + $0xa8] sm:$0xff]
  %v36 = vld [vmem:[%s0 + $0xb0] sm:$0xff]
  %v37 = vld [vmem:[%s0 + $0xb8] sm:$0xff]
  %v38 = vld [vmem:[%s0 + $0xc0] sm:$0x1]
  %v39 = vld [vmem:[%s0 + $0xc8] sm:$0x1]
  %v40 = vld [vmem:[%s0 + $0xd0] sm:$0x1]
  %v41 = vld [vmem:[%s0 + $0xd8] sm:$0x1]
  %v42 = vadd.f32 %v14, %v18
  %v43 = vadd.f32 %v42, %v22
  %v44 = vadd.f32 %v43, %v26
  %v45 = vadd.f32 %v44, %v30
  %v46 = vadd.f32 %v45, %v34
  %vm47 = vcmask 1040384
  %v48 = vsel %vm47, %v38, 0.0
  %v49 = vadd.f32 %v46, %v48
  %v50 = vrot.slane %v49, 4
  %v51 = vadd.f32 %v49, %v50
  %v52 = vrot.slane %v51, 2
  %v53 = vadd.f32 %v51, %v52
  %v54 = vrot.slane %v53, 1
  %v55 = vadd.f32 %v53, %v54
  %v56 = vadd.f32 %v15, %v19
  %v57 = vadd.f32 %v56, %v23
  %v58 = vadd.f32 %v57, %v27
  %v59 = vadd.f32 %v58, %v31
  %v60 = vadd.f32 %v59, %v35
  %v61 = vsel %vm47, %v39, 0.0
  %v62 = vadd.f32 %v60, %v61
  %v63 = vrot.slane %v62, 4
  %v64 = vadd.f32 %v62, %v63
  %v65 = vrot.slane %v64, 2
  %v66 = vadd.f32 %v64, %v65
  %v67 = vrot.slane %v66, 1
  %v68 = vadd.f32 %v66, %v67
  %v69 = vadd.f32 %v16, %v20
  %v70 = vadd.f32 %v69, %v24
  %v71 = vadd.f32 %v70, %v28
  %v72 = vadd.f32 %v71, %v32
  %v73 = vadd.f32 %v72, %v36
  %v74 = vsel %vm47, %v40, 0.0
  %v75 = vadd.f32 %v73, %v74
  %v76 = vrot.slane %v75, 4
  %v77 = vadd.f32 %v75, %v76
  %v78 = vrot.slane %v77, 2
  %v79 = vadd.f32 %v77, %v78
  %v80 = vrot.slane %v79, 1
  %v81 = vadd.f32 %v79, %v80
  %v82 = vadd.f32 %v17, %v21
  %v83 = vadd.f32 %v82, %v25
  %v84 = vadd.f32 %v83, %v29
  %v85 = vadd.f32 %v84, %v33
  %v86 = vadd.f32 %v85, %v37
  %v87 = vsel %vm47, %v41, 0.0
  %v88 = vadd.f32 %v86, %v87
  %v89 = vrot.slane %v88, 4
  %v90 = vadd.f32 %v88, %v89
  %v91 = vrot.slane %v90, 2
  %v92 = vadd.f32 %v90, %v91
  %v93 = vrot.slane %v92, 1
  %v94 = vadd.f32 %v92, %v93
  %v95 = vmul.f32 %v14, %v14
  %v96 = vmul.f32 %v15, %v15
  %v97 = vmul.f32 %v16, %v16
  %v98 = vmul.f32 %v17, %v17
  %v99 = vmul.f32 %v18, %v18
  %v100 = vmul.f32 %v19, %v19
  %v101 = vmul.f32 %v20, %v20
  %v102 = vmul.f32 %v21, %v21
  %v103 = vmul.f32 %v22, %v22
  %v104 = vmul.f32 %v23, %v23
  %v105 = vmul.f32 %v24, %v24
  %v106 = vmul.f32 %v25, %v25
  %v107 = vmul.f32 %v26, %v26
  %v108 = vmul.f32 %v27, %v27
  %v109 = vmul.f32 %v28, %v28
  %v110 = vmul.f32 %v29, %v29
  %v111 = vmul.f32 %v30, %v30
  %v112 = vmul.f32 %v31, %v31
  %v113 = vmul.f32 %v32, %v32
  %v114 = vmul.f32 %v33, %v33
  %v115 = vmul.f32 %v34, %v34
  %v116 = vmul.f32 %v35, %v35
  %v117 = vmul.f32 %v36, %v36
  %v118 = vmul.f32 %v37, %v37
  %v119 = vmul.f32 %v38, %v38
  %v120 = vmul.f32 %v39, %v39
  %v121 = vmul.f32 %v40, %v40
  %v122 = vmul.f32 %v41, %v41
  %v123 = vadd.f32 %v95, %v99
  %v124 = vadd.f32 %v123, %v103
  %v125 = vadd.f32 %v124, %v107
  %v126 = vadd.f32 %v125, %v111
  %v127 = vadd.f32 %v126, %v115
  %v128 = vsel %vm47, %v119, 0.0
  %v129 = vadd.f32 %v127, %v128
  %v130 = vrot.slane %v129, 4
  %v131 = vadd.f32 %v129, %v130
  %v132 = vrot.slane %v131, 2
  %v133 = vadd.f32 %v131, %v132
  %v134 = vrot.slane %v133, 1
  %v135 = vadd.f32 %v133, %v134
  %v136 = vadd.f32 %v96, %v100
  %v137 = vadd.f32 %v136, %v104
  %v138 = vadd.f32 %v137, %v108
  %v139 = vadd.f32 %v138, %v112
  %v140 = vadd.f32 %v139, %v116
  %v141 = vsel %vm47, %v120, 0.0
  %v142 = vadd.f32 %v140, %v141
  %v143 = vrot.slane %v142, 4
  %v144 = vadd.f32 %v142, %v143
  %v145 = vrot.slane %v144, 2
  %v146 = vadd.f32 %v144, %v145
  %v147 = vrot.slane %v146, 1
  %v148 = vadd.f32 %v146, %v147
  %v149 = vadd.f32 %v97, %v101
  %v150 = vadd.f32 %v149, %v105
  %v151 = vadd.f32 %v150, %v109
  %v152 = vadd.f32 %v151, %v113
  %v153 = vadd.f32 %v152, %v117
  %v154 = vsel %vm47, %v121, 0.0
  %v155 = vadd.f32 %v153, %v154
  %v156 = vrot.slane %v155, 4
  %v157 = vadd.f32 %v155, %v156
  %v158 = vrot.slane %v157, 2
  %v159 = vadd.f32 %v157, %v158
  %v160 = vrot.slane %v159, 1
  %v161 = vadd.f32 %v159, %v160
  %v162 = vadd.f32 %v98, %v102
  %v163 = vadd.f32 %v162, %v106
  %v164 = vadd.f32 %v163, %v110
  %v165 = vadd.f32 %v164, %v114
  %v166 = vadd.f32 %v165, %v118
  %v167 = vsel %vm47, %v122, 0.0
  %v168 = vadd.f32 %v166, %v167
  %v169 = vrot.slane %v168, 4
  %v170 = vadd.f32 %v168, %v169
  %v171 = vrot.slane %v170, 2
  %v172 = vadd.f32 %v170, %v171
  %v173 = vrot.slane %v172, 1
  %v174 = vadd.f32 %v172, %v173
  %v175 = vmul.f32 %v55, 0.020408163
  %v176 = vmul.f32 %v68, 0.020408163
  %v177 = vmul.f32 %v81, 0.020408163
  %v178 = vmul.f32 %v94, 0.020408163
  %v179 = vmul.f32 %v135, 0.020408163
  %v180 = vmul.f32 %v148, 0.020408163
  %v181 = vmul.f32 %v161, 0.020408163
  %v182 = vmul.f32 %v174, 0.020408163
  %v183 = vmul.f32 %v175, %v175
  %v184 = vmul.f32 %v176, %v176
  %v185 = vmul.f32 %v177, %v177
  %v186 = vmul.f32 %v178, %v178
  %v187 = vsub.f32 %v179, %v183
  %v188 = vsub.f32 %v180, %v184
  %v189 = vsub.f32 %v181, %v185
  %v190 = vsub.f32 %v182, %v186
  %v191 = vmax.f32 %v187, 0.0
  %v192 = vmax.f32 %v188, 0.0
  %v193 = vmax.f32 %v189, 0.0
  %v194 = vmax.f32 %v190, 0.0
  %v195 = vadd.f32 %v191, 1e-05
  %v196 = vadd.f32 %v192, 1e-05
  %v197 = vadd.f32 %v193, 1e-05
  %v198 = vadd.f32 %v194, 1e-05
  %v199 = vrsqrt.pop %v195
  %v200 = vrsqrt.pop %v196
  %v201 = vrsqrt.pop %v197
  %v202 = vrsqrt.pop %v198
  %v203 = vld [vmem:[%s2] sm:$0xff]
  %v205 = vlaneseq
  %v206 = vshrl.u32 %v205, 7
  %v207 = vsub.s32 0, %v206
  %v208 = vrot.slane %v203, %v207
  %v209 = vlaneseq
  %v210 = vshrl.u32 %v209, 7
  %v211 = vsub.s32 2, %v210
  %v212 = vrot.slane %v203, %v211
  %v213 = vlaneseq
  %v214 = vshrl.u32 %v213, 7
  %v215 = vsub.s32 4, %v214
  %v216 = vrot.slane %v203, %v215
  %v217 = vlaneseq
  %v218 = vshrl.u32 %v217, 7
  %v219 = vsub.s32 6, %v218
  %v220 = vrot.slane %v203, %v219
  %v225 = vmul.f32 %v199, %v208
  %v226 = vmul.f32 %v200, %v212
  %v227 = vmul.f32 %v201, %v216
  %v228 = vmul.f32 %v202, %v220
  %v229 = vmul.f32 %v175, %v225
  %v230 = vmul.f32 %v176, %v226
  %v231 = vmul.f32 %v177, %v227
  %v232 = vmul.f32 %v178, %v228
  %v237 = vcombine.low %v229, %v230
  %v238 = vcombine.low %v231, %v232
  %v240 = vunpack.c.l.s4 1983009808
  %v241 = vunpack.c.0.s8 %v240
  %v242 = vlaneseq
  %v243 = vshrl.u32 %v242, 7
  %v244 = vsub.s32 %v241, %v243
  %v245 = vrot.slane %v237, %v244
  %v247 = vunpack.c.l.s4 1983009808
  %v248 = vunpack.c.0.s8 %v247
  %v249 = vlaneseq
  %v250 = vshrl.u32 %v249, 7
  %v251 = vsub.s32 %v248, %v250
  %v252 = vrot.slane %v238, %v251
  %v253 = vcombine.low %v245, %v252
  %v254 = vrot.slane %v253, 7
  %v256 = vsub.f32 %v203, %v254
  %v257 = vlaneseq
  %v258 = vshrl.u32 %v257, 7
  %v259 = vsub.s32 0, %v258
  %v260 = vrot.slane %v225, %v259
  %v261 = vlaneseq
  %v262 = vshrl.u32 %v261, 7
  %v263 = vsub.s32 0, %v262
  %v264 = vrot.slane %v226, %v263
  %v265 = vlaneseq
  %v266 = vshrl.u32 %v265, 7
  %v267 = vsub.s32 0, %v266
  %v268 = vrot.slane %v227, %v267
  %v269 = vlaneseq
  %v270 = vshrl.u32 %v269, 7
  %v271 = vsub.s32 0, %v270
  %v272 = vrot.slane %v228, %v271
  %v273 = vmul.f32 %v14, %v260
  %v274 = vmul.f32 %v15, %v264
  %v275 = vmul.f32 %v16, %v268
  %v276 = vmul.f32 %v17, %v272
  %v277 = vmul.f32 %v18, %v260
  %v278 = vmul.f32 %v19, %v264
  %v279 = vmul.f32 %v20, %v268
  %v280 = vmul.f32 %v21, %v272
  %v281 = vmul.f32 %v22, %v260
  %v282 = vmul.f32 %v23, %v264
  %v283 = vmul.f32 %v24, %v268
  %v284 = vmul.f32 %v25, %v272
  %v285 = vmul.f32 %v26, %v260
  %v286 = vmul.f32 %v27, %v264
  %v287 = vmul.f32 %v28, %v268
  %v288 = vmul.f32 %v29, %v272
  %v289 = vmul.f32 %v30, %v260
  %v290 = vmul.f32 %v31, %v264
  %v291 = vmul.f32 %v32, %v268
  %v292 = vmul.f32 %v33, %v272
  %v293 = vmul.f32 %v34, %v260
  %v294 = vmul.f32 %v35, %v264
  %v295 = vmul.f32 %v36, %v268
  %v296 = vmul.f32 %v37, %v272
  %v297 = vmul.f32 %v38, %v260
  %v298 = vmul.f32 %v39, %v264
  %v299 = vmul.f32 %v40, %v268
  %v300 = vmul.f32 %v41, %v272
  %v302 = vlaneseq
  %v303 = vshrl.u32 %v302, 7
  %v304 = vsub.s32 1, %v303
  %v305 = vrot.slane %v256, %v304
  %v306 = vlaneseq
  %v307 = vshrl.u32 %v306, 7
  %v308 = vsub.s32 3, %v307
  %v309 = vrot.slane %v256, %v308
  %v310 = vlaneseq
  %v311 = vshrl.u32 %v310, 7
  %v312 = vsub.s32 5, %v311
  %v313 = vrot.slane %v256, %v312
  %v314 = vlaneseq
  %v315 = vshrl.u32 %v314, 7
  %v316 = vsub.s32 7, %v315
  %v317 = vrot.slane %v256, %v316
  %v322 = vlaneseq
  %v323 = vshrl.u32 %v322, 7
  %v324 = vsub.s32 1, %v323
  %v325 = vrot.slane %v305, %v324
  %v326 = vlaneseq
  %v327 = vshrl.u32 %v326, 7
  %v328 = vsub.s32 1, %v327
  %v329 = vrot.slane %v309, %v328
  %v330 = vlaneseq
  %v331 = vshrl.u32 %v330, 7
  %v332 = vsub.s32 1, %v331
  %v333 = vrot.slane %v313, %v332
  %v334 = vlaneseq
  %v335 = vshrl.u32 %v334, 7
  %v336 = vsub.s32 1, %v335
  %v337 = vrot.slane %v317, %v336
  %v338 = vadd.f32 %v273, %v325
  %v339 = vadd.f32 %v274, %v329
  %v340 = vadd.f32 %v275, %v333
  %v341 = vadd.f32 %v276, %v337
  %v342 = vadd.f32 %v277, %v325
  %v343 = vadd.f32 %v278, %v329
  %v344 = vadd.f32 %v279, %v333
  %v345 = vadd.f32 %v280, %v337
  %v346 = vadd.f32 %v281, %v325
  %v347 = vadd.f32 %v282, %v329
  %v348 = vadd.f32 %v283, %v333
  %v349 = vadd.f32 %v284, %v337
  %v350 = vadd.f32 %v285, %v325
  %v351 = vadd.f32 %v286, %v329
  %v352 = vadd.f32 %v287, %v333
  %v353 = vadd.f32 %v288, %v337
  %v354 = vadd.f32 %v289, %v325
  %v355 = vadd.f32 %v290, %v329
  %v356 = vadd.f32 %v291, %v333
  %v357 = vadd.f32 %v292, %v337
  %v358 = vadd.f32 %v293, %v325
  %v359 = vadd.f32 %v294, %v329
  %v360 = vadd.f32 %v295, %v333
  %v361 = vadd.f32 %v296, %v337
  %v362 = vadd.f32 %v297, %v325
  %v363 = vadd.f32 %v298, %v329
  %v364 = vadd.f32 %v299, %v333
  %v365 = vadd.f32 %v300, %v337
  %v366 = vld [vmem:[%s1] sm:$0xff]
  %v367 = vld [vmem:[%s1 + $0x8] sm:$0xff]
  %v368 = vld [vmem:[%s1 + $0x10] sm:$0xff]
  %v369 = vld [vmem:[%s1 + $0x18] sm:$0xff]
  %v370 = vld [vmem:[%s1 + $0x20] sm:$0xff]
  %v371 = vld [vmem:[%s1 + $0x28] sm:$0xff]
  %v372 = vld [vmem:[%s1 + $0x30] sm:$0xff]
  %v373 = vld [vmem:[%s1 + $0x38] sm:$0xff]
  %v374 = vld [vmem:[%s1 + $0x40] sm:$0xff]
  %v375 = vld [vmem:[%s1 + $0x48] sm:$0xff]
  %v376 = vld [vmem:[%s1 + $0x50] sm:$0xff]
  %v377 = vld [vmem:[%s1 + $0x58] sm:$0xff]
  %v378 = vld [vmem:[%s1 + $0x60] sm:$0xff]
  %v379 = vld [vmem:[%s1 + $0x68] sm:$0xff]
  %v380 = vld [vmem:[%s1 + $0x70] sm:$0xff]
  %v381 = vld [vmem:[%s1 + $0x78] sm:$0xff]
  %v382 = vld [vmem:[%s1 + $0x80] sm:$0xff]
  %v383 = vld [vmem:[%s1 + $0x88] sm:$0xff]
  %v384 = vld [vmem:[%s1 + $0x90] sm:$0xff]
  %v385 = vld [vmem:[%s1 + $0x98] sm:$0xff]
  %v386 = vld [vmem:[%s1 + $0xa0] sm:$0xff]
  %v387 = vld [vmem:[%s1 + $0xa8] sm:$0xff]
  %v388 = vld [vmem:[%s1 + $0xb0] sm:$0xff]
  %v389 = vld [vmem:[%s1 + $0xb8] sm:$0xff]
  %v390 = vld [vmem:[%s1 + $0xc0] sm:$0x1]
  %v391 = vld [vmem:[%s1 + $0xc8] sm:$0x1]
  %v392 = vld [vmem:[%s1 + $0xd0] sm:$0x1]
  %v393 = vld [vmem:[%s1 + $0xd8] sm:$0x1]
  %v394 = vadd.f32 %v338, %v366
  %v395 = vadd.f32 %v339, %v367
  %v396 = vadd.f32 %v340, %v368
  %v397 = vadd.f32 %v341, %v369
  %v398 = vadd.f32 %v342, %v370
  %v399 = vadd.f32 %v343, %v371
  %v400 = vadd.f32 %v344, %v372
  %v401 = vadd.f32 %v345, %v373
  %v402 = vadd.f32 %v346, %v374
  %v403 = vadd.f32 %v347, %v375
  %v404 = vadd.f32 %v348, %v376
  %v405 = vadd.f32 %v349, %v377
  %v406 = vadd.f32 %v350, %v378
  %v407 = vadd.f32 %v351, %v379
  %v408 = vadd.f32 %v352, %v380
  %v409 = vadd.f32 %v353, %v381
  %v410 = vadd.f32 %v354, %v382
  %v411 = vadd.f32 %v355, %v383
  %v412 = vadd.f32 %v356, %v384
  %v413 = vadd.f32 %v357, %v385
  %v414 = vadd.f32 %v358, %v386
  %v415 = vadd.f32 %v359, %v387
  %v416 = vadd.f32 %v360, %v388
  %v417 = vadd.f32 %v361, %v389
  %v418 = vadd.f32 %v362, %v390
  %v419 = vadd.f32 %v363, %v391
  %v420 = vadd.f32 %v364, %v392
  %v421 = vadd.f32 %v365, %v393
  %422 = vst [vmem:[%s3] sm:$0xff] %v394
  %423 = vst [vmem:[%s3 + $0x8] sm:$0xff] %v395
  %424 = vst [vmem:[%s3 + $0x10] sm:$0xff] %v396
  %425 = vst [vmem:[%s3 + $0x18] sm:$0xff] %v397
  %426 = vst [vmem:[%s3 + $0x20] sm:$0xff] %v398
  %427 = vst [vmem:[%s3 + $0x28] sm:$0xff] %v399
  %428 = vst [vmem:[%s3 + $0x30] sm:$0xff] %v400
  %429 = vst [vmem:[%s3 + $0x38] sm:$0xff] %v401
  %430 = vst [vmem:[%s3 + $0x40] sm:$0xff] %v402
  %431 = vst [vmem:[%s3 + $0x48] sm:$0xff] %v403
  %432 = vst [vmem:[%s3 + $0x50] sm:$0xff] %v404
  %433 = vst [vmem:[%s3 + $0x58] sm:$0xff] %v405
  %434 = vst [vmem:[%s3 + $0x60] sm:$0xff] %v406
  %435 = vst [vmem:[%s3 + $0x68] sm:$0xff] %v407
  %436 = vst [vmem:[%s3 + $0x70] sm:$0xff] %v408
  %437 = vst [vmem:[%s3 + $0x78] sm:$0xff] %v409
  %438 = vst [vmem:[%s3 + $0x80] sm:$0xff] %v410
  %439 = vst [vmem:[%s3 + $0x88] sm:$0xff] %v411
  %440 = vst [vmem:[%s3 + $0x90] sm:$0xff] %v412
  %441 = vst [vmem:[%s3 + $0x98] sm:$0xff] %v413
  %442 = vst [vmem:[%s3 + $0xa0] sm:$0xff] %v414
  %443 = vst [vmem:[%s3 + $0xa8] sm:$0xff] %v415
  %444 = vst [vmem:[%s3 + $0xb0] sm:$0xff] %v416
  %445 = vst [vmem:[%s3 + $0xb8] sm:$0xff] %v417
  %446 = vst [vmem:[%s3 + $0xc0] sm:$0x1] %v418
  %447 = vst [vmem:[%s3 + $0xc8] sm:$0x1] %v419
  %448 = vst [vmem:[%s3 + $0xd0] sm:$0x1] %v420
  %449 = vst [vmem:[%s3 + $0xd8] sm:$0x1] %v421
  // Predicated region
  $region14: #{batchnorm_add.1} parent=0 // pred_check
    _
  $region15: #{batchnorm_add.1} parent=0 // pred_check_branch
    %451 = sbr.rel (0) target = $region17
  $region16: #{batchnorm_add.1} parent=0 // pred_region
    _
  $region17: #{batchnorm_add.1} parent=0 // pred_fallthru
    _
  // Predicated region
  $region18: #{batchnorm_add.1} parent=0 // pred_check
    _
  $region19: #{batchnorm_add.1} parent=0 // pred_check_branch
    %453 = sbr.rel (0) target = $region21
  $region20: #{batchnorm_add.1} parent=0 // pred_region
    _
  $region21: #{batchnorm_add.1} parent=0 // pred_fallthru
    _

</llo_original>
